<compile_context>
chip_gen: v5e
topology: v5e:2x2
jax: 0.10.0
libtpu: 0.0.40
codegen_flags: <defaults>
</compile_context>

<pallas_src>
import functools

import jax
import jax.numpy as jnp
from jax.experimental import pallas as pl
from jax.experimental.pallas import tpu as pltpu


def _round_up(x, m):
    return (x + m - 1) // m * m


def _cdiv(a, b):
    return (a + b - 1) // b


def _vmem_limit_bytes():
    """Generation-aware scoped-VMEM cap: ~48 MiB on v7x, ~96 MiB on v5e/v6e."""
    try:
        cap = pltpu.get_tpu_info().vmem_capacity_bytes
    except Exception:
        cap = 64 * 1024 * 1024
    return int(min(cap * 3 // 4, 100 * 1024 * 1024))


def _choose_tiles(R, L, itemsize, row_align, *, target_bytes=4 * 1024 * 1024,
                  max_lanes=4096):
    """Pick (TR, TL) ~ target_bytes, respecting dtype tiling alignment."""
    # Lane tile: full extent if small (always legal), else a multiple of 128.
    TL = L if L <= max_lanes else max_lanes
    lane_cols = _round_up(TL, 128)  # vreg footprint per row
    tr = (target_bytes // (lane_cols * itemsize)) // row_align * row_align
    tr = max(row_align, tr)
    if tr >= R:
        tr = R  # full extent is always a legal block dim
    TR = tr
    # v7x megacore: make sure the parallel row axis has >= 2 blocks when the
    # row count allows an aligned split (otherwise one TensorCore idles in
    # the stats pass).  No effect on single-TC v5e/v6e beyond smaller tiles.
    if TR >= R and R >= 2 * row_align:
        TR = _round_up((R + 1) // 2, row_align)
    return TR, TL


def _stats_kernel(x_ref, s1_ref, s2_ref, *, block_lanes, total_lanes, mask_tail):
    """Accumulate per-row sum and sum-of-squares across lane chunks."""
    l = pl.program_id(1)

    @pl.when(l == 0)
    def _():
        s1_ref[...] = jnp.zeros_like(s1_ref)
        s2_ref[...] = jnp.zeros_like(s2_ref)

    x = x_ref[...].astype(jnp.float32)
    if mask_tail:
        # Tail lane chunk: zero out-of-range lanes before summing (OOB block
        # reads are not guaranteed to be zero).
        lane = jax.lax.broadcasted_iota(jnp.int32, x.shape, dimension=1)
        valid = (l * block_lanes + lane) < total_lanes
        x = jnp.where(valid, x, 0.0)

    s1_ref[...] += jnp.sum(x, axis=1, keepdims=True)
    s2_ref[...] += jnp.sum(x * x, axis=1, keepdims=True)


def _norm_kernel(x_ref, scale_ref, shift_ref, out_ref):
    """y = x * scale_row + shift_row (one fused affine, lane-dense store)."""
    x = x_ref[...].astype(jnp.float32)
    out_ref[...] = (x * scale_ref[...] + shift_ref[...]).astype(out_ref.dtype)


def ibnorm(x_nchw, gamma, beta, num_bn, eps=1e-5):
    """IBNorm forward. x_nchw: (N, C, H, W). gamma/beta: (num_bn,)."""
    N, C, H, W = x_nchw.shape
    L = H * W
    R = N * C
    out_dtype = x_nchw.dtype
    itemsize = jnp.dtype(x_nchw.dtype).itemsize
    row_align = max(8, 32 // itemsize)  # 8 (f32) / 16 (bf16) / 32 (int8, fp8)

    # (N*C, L): rows on sublanes, spatial on lanes.  No padding, no copies.
    x2 = x_nchw.reshape(R, L)

    TR, TL = _choose_tiles(R, L, itemsize, row_align)
    grid = (_cdiv(R, TR), _cdiv(L, TL))
    mask_tail = (L % TL) != 0
    vmem_limit = _vmem_limit_bytes()

    in_bytes = R * L * itemsize

    # ---- Phase 1: per-row sum / sum-of-squares (single traversal of x) -----
    s1, s2 = pl.pallas_call(
        functools.partial(_stats_kernel, block_lanes=TL, total_lanes=L,
                          mask_tail=mask_tail),
        out_shape=(
            jax.ShapeDtypeStruct((R, 1), jnp.float32),
            jax.ShapeDtypeStruct((R, 1), jnp.float32),
        ),
        grid=grid,
        in_specs=[pl.BlockSpec((TR, TL), lambda r, l: (r, l))],
        out_specs=(
            pl.BlockSpec((TR, 1), lambda r, l: (r, 0)),
            pl.BlockSpec((TR, 1), lambda r, l: (r, 0)),
        ),
        compiler_params=pltpu.CompilerParams(
            dimension_semantics=("parallel", "arbitrary"),
            vmem_limit_bytes=vmem_limit,
        ),
        cost_estimate=pl.CostEstimate(
            flops=3 * R * L, transcendentals=0,
            bytes_accessed=in_bytes + 8 * R),
    )(x2)

    # ---- Tiny per-channel combine (plain XLA, O(N*C) elements) -------------
    s1 = s1.reshape(N, C)
    s2 = s2.reshape(N, C)
    n_bn = jnp.float32(N * L)
    n_in = jnp.float32(L)

    g = gamma.reshape(num_bn).astype(jnp.float32)
    b = beta.reshape(num_bn).astype(jnp.float32)

    # BatchNorm channels [0, num_bn): biased stats over (N, H, W).
    mean_bn = s1[:, :num_bn].sum(axis=0) / n_bn
    var_bn = jnp.maximum(s2[:, :num_bn].sum(axis=0) / n_bn - mean_bn * mean_bn, 0.0)
    scale_bn = g * jax.lax.rsqrt(var_bn + eps)               # (num_bn,)
    shift_bn = b - mean_bn * scale_bn

    # InstanceNorm channels [num_bn, C): biased stats over (H, W) per sample.
    mean_in = s1[:, num_bn:] / n_in                          # (N, C - num_bn)
    var_in = jnp.maximum(s2[:, num_bn:] / n_in - mean_in * mean_in, 0.0)
    scale_in = jax.lax.rsqrt(var_in + eps)
    shift_in = -mean_in * scale_in

    scale = jnp.concatenate(
        [jnp.broadcast_to(scale_bn, (N, num_bn)), scale_in], axis=1).reshape(R, 1)
    shift = jnp.concatenate(
        [jnp.broadcast_to(shift_bn, (N, num_bn)), shift_in], axis=1).reshape(R, 1)

    # ---- Phase 2: re-stream x, apply one fused affine per row --------------
    y = pl.pallas_call(
        _norm_kernel,
        out_shape=jax.ShapeDtypeStruct((R, L), out_dtype),
        grid=grid,
        in_specs=[
            pl.BlockSpec((TR, TL), lambda r, l: (r, l)),
            pl.BlockSpec((TR, 1), lambda r, l: (r, 0)),
            pl.BlockSpec((TR, 1), lambda r, l: (r, 0)),
        ],
        out_specs=pl.BlockSpec((TR, TL), lambda r, l: (r, l)),
        compiler_params=pltpu.CompilerParams(
            dimension_semantics=("parallel", "parallel"),
            vmem_limit_bytes=vmem_limit,
        ),
        cost_estimate=pl.CostEstimate(
            flops=2 * R * L, transcendentals=0,
            bytes_accessed=2 * in_bytes + 8 * R),
    )(x2, scale, shift)

    return y.reshape(N, C, H, W)


def _reference(x, gamma, beta, num_bn, eps=1e-5):
    """Plain-JAX reference mirroring PyTorch training-mode IBNorm forward."""
    xb = x[:, :num_bn]
    mb = xb.mean(axis=(0, 2, 3), keepdims=True)
    vb = ((xb - mb) ** 2).mean(axis=(0, 2, 3), keepdims=True)
    yb = (xb - mb) / jnp.sqrt(vb + eps) * gamma.reshape(1, -1, 1, 1) \
        + beta.reshape(1, -1, 1, 1)
    xi = x[:, num_bn:]
    mi = xi.mean(axis=(2, 3), keepdims=True)
    vi = ((xi - mi) ** 2).mean(axis=(2, 3), keepdims=True)
    yi = (xi - mi) / jnp.sqrt(vi + eps)
    return jnp.concatenate([yb, yi], axis=1)


if __name__ == "__main__":
    # Module config: IBNorm(num_features=4, split=0.5) -> num_BN = int(4*0.5+0.5) = 2
    num_features = 4
    split = 0.5
    num_bn = int(num_features * split + 0.5)

    key = jax.random.PRNGKey(0)
    x = jax.random.normal(key, (2, num_features, 16, 16), dtype=jnp.float32)

    # Deterministic affine params for the BatchNorm half (synthetic, not a checkpoint).
    gamma = 1.0 + 0.1 * jnp.arange(num_bn, dtype=jnp.float32)
    beta = 0.05 * jnp.arange(num_bn, dtype=jnp.float32)

    y = ibnorm(x, gamma, beta, num_bn)
    y = jax.block_until_ready(y)

    y_ref = _reference(x, gamma, beta, num_bn)
    assert y.shape == x.shape and y.dtype == jnp.float32
    assert jnp.allclose(y, y_ref, atol=1e-4, rtol=1e-4)

    print("KERNEL_OK")
</pallas_src>

<mosaic_0001>
module attributes {stable_mosaic.version = 11 : i64} {
  func.func @_stats_kernel(%arg0: i32, %arg1: i32, %arg2: memref<8x256xf32, #tpu.memory_space<vmem>>, %arg3: memref<8x1xf32, #tpu.memory_space<vmem>>, %arg4: memref<8x1xf32, #tpu.memory_space<vmem>>) attributes {dimension_semantics = [#tpu.dimension_semantics<parallel>, #tpu.dimension_semantics<arbitrary>], iteration_bounds = array<i64: 1, 1>, scalar_prefetch = 0 : i64, scratch_operands = 0 : i64, tpu.core_type = #tpu.core_type<tc>, window_params = [{transform_indices = @transform_0, window_bounds = array<i64: 8, 256>}, {transform_indices = @transform_1, window_bounds = array<i64: 8, 1>}, {transform_indices = @transform_2, window_bounds = array<i64: 8, 1>}]} {
    %c0_i32 = arith.constant 0 : i32
    %0 = arith.cmpi eq, %arg1, %c0_i32 : i32
    %1 = arith.extui %0 : i1 to i32
    %c0_i32_0 = arith.constant 0 : i32
    %2 = arith.cmpi ne, %1, %c0_i32_0 : i32
    scf.if %2 {
      %cst_11 = arith.constant 0.000000e+00 : f32
      %15 = vector.broadcast %cst_11 : f32 to vector<8x1xf32>
      %c0_12 = arith.constant 0 : index
      %c0_13 = arith.constant 0 : index
      %16 = vector.load %arg3[%c0_12, %c0_13] : memref<8x1xf32, #tpu.memory_space<vmem>>, vector<8x1xf32>
      tpu.vector_store %arg3[%c0_12, %c0_13], %15 {strides = array<i32>} : memref<8x1xf32, #tpu.memory_space<vmem>>, vector<8x1xf32>,
      %cst_14 = arith.constant 0.000000e+00 : f32
      %17 = vector.broadcast %cst_14 : f32 to vector<8x1xf32>
      %c0_15 = arith.constant 0 : index
      %c0_16 = arith.constant 0 : index
      %18 = vector.load %arg4[%c0_15, %c0_16] : memref<8x1xf32, #tpu.memory_space<vmem>>, vector<8x1xf32>
      tpu.vector_store %arg4[%c0_15, %c0_16], %17 {strides = array<i32>} : memref<8x1xf32, #tpu.memory_space<vmem>>, vector<8x1xf32>,
    } else {
    }
    %c0 = arith.constant 0 : index
    %c0_1 = arith.constant 0 : index
    %3 = vector.load %arg2[%c0, %c0_1] : memref<8x256xf32, #tpu.memory_space<vmem>>, vector<8x256xf32>
    %c0_2 = arith.constant 0 : index
    %c0_3 = arith.constant 0 : index
    %4 = vector.load %arg3[%c0_2, %c0_3] : memref<8x1xf32, #tpu.memory_space<vmem>>, vector<8x1xf32>
    %cst = arith.constant dense<0.000000e+00> : vector<8xf32>
    %5 = vector.multi_reduction <add>, %3, %cst [1] : vector<8x256xf32> to vector<8xf32>
    %6 = vector.shape_cast %5 : vector<8xf32> to vector<8x1xf32>
    %7 = arith.addf %4, %6 : vector<8x1xf32>
    %c0_4 = arith.constant 0 : index
    %c0_5 = arith.constant 0 : index
    %8 = vector.load %arg3[%c0_4, %c0_5] : memref<8x1xf32, #tpu.memory_space<vmem>>, vector<8x1xf32>
    tpu.vector_store %arg3[%c0_4, %c0_5], %7 {strides = array<i32>} : memref<8x1xf32, #tpu.memory_space<vmem>>, vector<8x1xf32>,
    %c0_6 = arith.constant 0 : index
    %c0_7 = arith.constant 0 : index
    %9 = vector.load %arg4[%c0_6, %c0_7] : memref<8x1xf32, #tpu.memory_space<vmem>>, vector<8x1xf32>
    %10 = arith.mulf %3, %3 : vector<8x256xf32>
    %cst_8 = arith.constant dense<0.000000e+00> : vector<8xf32>
    %11 = vector.multi_reduction <add>, %10, %cst_8 [1] : vector<8x256xf32> to vector<8xf32>
    %12 = vector.shape_cast %11 : vector<8xf32> to vector<8x1xf32>
    %13 = arith.addf %9, %12 : vector<8x1xf32>
    %c0_9 = arith.constant 0 : index
    %c0_10 = arith.constant 0 : index
    %14 = vector.load %arg4[%c0_9, %c0_10] : memref<8x1xf32, #tpu.memory_space<vmem>>, vector<8x1xf32>
    tpu.vector_store %arg4[%c0_9, %c0_10], %13 {strides = array<i32>} : memref<8x1xf32, #tpu.memory_space<vmem>>, vector<8x1xf32>,
    return
  }
  func.func @transform_0(%arg0: i32, %arg1: i32) -> (i32, i32) {
    %c0_i32 = arith.constant 0 : i32
    return %arg0, %arg1 : i32, i32
  }
  func.func @transform_1(%arg0: i32, %arg1: i32) -> (i32, i32) {
    %c0_i32 = arith.constant 0 : i32
    %c0_i32_0 = arith.constant 0 : i32
    return %arg0, %c0_i32 : i32, i32
  }
  func.func @transform_2(%arg0: i32, %arg1: i32) -> (i32, i32) {
    %c0_i32 = arith.constant 0 : i32
    %c0_i32_0 = arith.constant 0 : i32
    return %arg0, %c0_i32 : i32, i32
  }
}

</mosaic_0001>

<llo_original>
// kernel: tpu_custom_call.1
$region0: #{tpu_custom_call.1}
  #allocation0 [shape = 'u32[]', space=smem, size = 0x4, offset = 0x4, fixed_abs, tag = 'smem constant byte address 0x4 - core index']
  #allocation1 [shape = 'u32[72,128]{1,0:T(1,128)}', space=vmem, size = 0x9000, scoped, tag = 'internal scratch']
  %s0 = inlined_call_operand.hbm [shape: f32[8,256], index: 0, kind: input, shape index: {}]
  %s1 = inlined_call_operand.vmem [shape: f32[8,1], index: 1, kind: output, shape index: {0}]
  %s2 = inlined_call_operand.vmem [shape: f32[8,1], index: 2, kind: output, shape index: {1}]
  %3 = xla_tuple %s1, %s2
  %s4 = sld [smem:[#allocation0]]
  $region30: #{tpu_custom_call.1} parent=0
    _
  %s6 = ssub.s32 1, %s4
  %s7 = scalar_select 0, %s6, %s4
  $region1: #{tpu_custom_call.1} parent=0
    #allocation2 [shape = 'u8[8192]{0}', space=vmem, size = 0x2000, scoped, tag = 'input window, operand 0, single buffered']
    #allocation3 [shape = 's32[1]{0}', space=sflag, size = 0x4, scoped, tag = 'scoped memory for tpu_custom_call.1']
    %8 = vsyncpa [#allocation3], 0
    // Predicated region
    $region2: #{tpu_custom_call.1} parent=1 // pred_check
      _
    $region3: #{tpu_custom_call.1} parent=1 // pred_check_branch
      %10 = sbr.rel (0) target = $region5
    $region4: #{tpu_custom_call.1} parent=1 // pred_region
      %12 = vsyncadd [#allocation3], 0
      %s14 = sshll.u32 %s0, 4
      %s15 = int_to_ptr.hbm [resolvable:$true] %s14
      %s16 = sshll.u32 [#allocation2], 4
      %s17 = int_to_ptr.vmem [resolvable:$true] %s16
      %19 = dma.hbm_to_vmem [thread:$0]  %s15, 256, %s17, [#allocation3]
    $region5: #{tpu_custom_call.1} parent=1 // pred_fallthru
      _
    // Predicated region
    $region6: #{tpu_custom_call.1} parent=1 // pred_check
      _
    $region7: #{tpu_custom_call.1} parent=1 // pred_check_branch
      %21 = sbr.rel (0) target = $region9
    $region8: #{tpu_custom_call.1} parent=1 // pred_region
      %23 = dma.done [#allocation3], 256
    $region9: #{tpu_custom_call.1} parent=1 // pred_fallthru
      _
    %p24 = scmp.eq.s32.totalorder 0, 0
    // Predicated region
    $region10: #{tpu_custom_call.1} parent=1 // pred_check
      %p25 = pneg %p24
    $region11: #{tpu_custom_call.1} parent=1 // pred_check_branch
      %27 = sbr.rel (%p25) target = $region13
    $region12: #{tpu_custom_call.1} parent=1 // pred_region
      %vm28 = vcmask 7168
      %29 = vst.msk [vmem:[%s1] sm:$0xff] %vm28, 0.0
      %30 = vst.msk [vmem:[%s2] sm:$0xff] %vm28, 0.0
    $region13: #{tpu_custom_call.1} parent=1 // pred_fallthru
      _
    %v31 = vld [vmem:[#allocation2] sm:$0xff]
    %v32 = vld [vmem:[#allocation2 + $0x8] sm:$0xff]
    %v33 = vld [vmem:[%s1] sm:$0xff]
    %v34 = vadd.f32 %v31, %v32
    %35 = vadd.xlane.f32.xlu0 %v34
    %v36 = vpop.xlane.xlu0 %35
    %v37 = vadd.f32 %v33, %v36
    %vm38 = vcmask 7168
    %39 = vst.msk [vmem:[%s1] sm:$0xff] %vm38, %v37
    %v40 = vld [vmem:[%s2] sm:$0xff]
    %v41 = vmul.f32 %v31, %v31
    %v42 = vmul.f32 %v32, %v32
    %v43 = vadd.f32 %v41, %v42
    %44 = vadd.xlane.f32.xlu0 %v43
    %v45 = vpop.xlane.xlu0 %44
    %v46 = vadd.f32 %v40, %v45
    %47 = vst.msk [vmem:[%s2] sm:$0xff] %vm38, %v46
    // Predicated region
    $region14: #{tpu_custom_call.1} parent=1 // pred_check
      _
    $region15: #{tpu_custom_call.1} parent=1 // pred_check_branch
      %49 = sbr.rel (0) target = $region17
    $region16: #{tpu_custom_call.1} parent=1 // pred_region
      _
    $region17: #{tpu_custom_call.1} parent=1 // pred_fallthru
      _
    // Predicated region
    $region18: #{tpu_custom_call.1} parent=1 // pred_check
      _
    $region19: #{tpu_custom_call.1} parent=1 // pred_check_branch
      %51 = sbr.rel (0) target = $region21
    $region20: #{tpu_custom_call.1} parent=1 // pred_region
      _
    $region21: #{tpu_custom_call.1} parent=1 // pred_fallthru
      _
    // Predicated region
    $region22: #{tpu_custom_call.1} parent=1 // pred_check
      _
    $region23: #{tpu_custom_call.1} parent=1 // pred_check_branch
      %53 = sbr.rel (0) target = $region25
    $region24: #{tpu_custom_call.1} parent=1 // pred_region
      _
    $region25: #{tpu_custom_call.1} parent=1 // pred_fallthru
      _
    // Predicated region
    $region26: #{tpu_custom_call.1} parent=1 // pred_check
      _
    $region27: #{tpu_custom_call.1} parent=1 // pred_check_branch
      %55 = sbr.rel (0) target = $region29
    $region28: #{tpu_custom_call.1} parent=1 // pred_region
      _
    $region29: #{tpu_custom_call.1} parent=1 // pred_fallthru
      _
    %56 = vsyncpa [#allocation3], 1

</llo_original>
